<compile_context>
chip_gen: v6e
topology: v6e:2x2x1
jax: 0.10.0
libtpu: 0.0.40
codegen_flags: <defaults>
</compile_context>

<pallas_src>
import functools

import jax
import jax.numpy as jnp
from jax import lax
from jax.experimental import pallas as pl
from jax.experimental.pallas import tpu as pltpu


def _round_up(x: int, m: int) -> int:
    return (x + m - 1) // m * m


def _ceil_div(a: int, b: int) -> int:
    return -(-a // b)


def _focal_loss_kernel(logits_ref, tgt_ref, out_ref, *, gamma: float):
    # logits_ref: (tR, C) block ; tgt_ref: (tR, 1) int32 ; out_ref: (tR, 1) f32
    # Rows beyond N in the (non-divisible) edge block hold unspecified data;
    # any NaN/inf they produce is per-row only and is masked off on writeback.
    logits = logits_ref[...].astype(jnp.float32)            # f32 for stable LSE
    tgt = tgt_ref[...]                                       # (tR, 1) int32

    # Numerically stable log-sum-exp over the class (lane) axis.
    m = jnp.max(logits, axis=1, keepdims=True)               # (tR, 1)
    lse = jnp.log(jnp.sum(jnp.exp(logits - m), axis=1, keepdims=True)) + m

    # Gather the target logit with a one-hot lane mask (no cross-lane gather).
    col = lax.broadcasted_iota(jnp.int32, logits.shape, 1)   # (tR, C)
    tgt_logit = jnp.sum(jnp.where(col == tgt, logits, 0.0), axis=1, keepdims=True)

    ce = lse - tgt_logit                                     # (tR, 1), >= 0
    pt = jnp.exp(-ce)
    omp = jnp.maximum(1.0 - pt, 0.0)                         # clamp fp noise

    g = float(gamma)
    if g == 0.0:
        w = jnp.ones_like(omp)
    elif g == 1.0:
        w = omp
    elif g == 2.0:                                           # common case: cheap VPU mul
        w = omp * omp
    else:
        w = jnp.power(omp, jnp.float32(g))

    out_ref[...] = (w * ce).astype(out_ref.dtype)


def _focal_loss_per_example(logits, targets, *, gamma=2.0, block_rows=None):
    """Per-row focal loss via Pallas. logits: (N, C); targets: (N,) int."""
    N, C = logits.shape
    itemsize = jnp.dtype(logits.dtype).itemsize
    c_lanes = _round_up(C, 128)   # lane-padded width actually occupied in VMEM

    # Per-row VMEM footprint estimate (bytes):
    #   2x double-buffered lane-padded logits block (input dtype)
    # + ~3 lane-padded f32 elementwise temporaries (cast / exp / where)
    # + the (rows, 1) targets and out blocks, each lane-padded to 128, 2x buffered.
    per_row_vmem = 2 * c_lanes * itemsize + 3 * c_lanes * 4 + 4 * 128 * 4

    if block_rows is None:
        vmem_budget = 24 << 20                                # working-set target
        block_rows = max(8, (vmem_budget // per_row_vmem) // 8 * 8)
        # Keep >= ~8 grid steps for large N so the "parallel" axis can feed
        # both TensorCores on v7x (no-op for small N).
        block_rows = min(block_rows, max(8, _round_up(_ceil_div(N, 8), 8)))
        block_rows = min(block_rows, _round_up(N, 8))
    block_rows = max(8, (block_rows // 8) * 8)

    # Explicit scoped-VMEM budget matched to the tile (+~50% headroom),
    # capped so it also fits v7x's 64 MiB physical VMEM.
    est = block_rows * per_row_vmem + (2 << 20)
    vmem_limit = int(min(max(est + est // 2, 16 << 20), 64 << 20))

    # Only the tiny targets vector gets reshaped/cast (N * 4 bytes); the big
    # logits array goes to the kernel untouched — no wrapper-side pad/copy.
    targets2d = targets.astype(jnp.int32).reshape(N, 1)

    grid = (_ceil_div(N, block_rows),)
    kernel = functools.partial(_focal_loss_kernel, gamma=float(gamma))

    cost = pl.CostEstimate(
        flops=6 * N * C,
        transcendentals=N * C + 3 * N,
        bytes_accessed=N * C * itemsize + N * 4 + N * 4,
    )

    out = pl.pallas_call(
        kernel,
        out_shape=jax.ShapeDtypeStruct((N, 1), jnp.float32),
        grid=grid,
        in_specs=[
            pl.BlockSpec((block_rows, C), lambda i: (i, 0)),   # logits tile
            pl.BlockSpec((block_rows, 1), lambda i: (i, 0)),   # targets tile
        ],
        out_specs=pl.BlockSpec((block_rows, 1), lambda i: (i, 0)),
        compiler_params=pltpu.CompilerParams(
            dimension_semantics=("parallel",),
            vmem_limit_bytes=vmem_limit,
        ),
        cost_estimate=cost,
    )(logits, targets2d)

    return out[:, 0]


def focal_loss(inputs, targets, *, gamma=2.0, alpha=None, reduction="mean"):
    """Forward pass of the PyTorch FocalLoss module."""
    # NOTE: `alpha` is accepted for signature parity but, exactly like the
    # reference forward, it is never applied.
    per_example = _focal_loss_per_example(inputs, targets, gamma=gamma)
    if reduction == "mean":
        return per_example.mean()
    elif reduction == "sum":
        return per_example.sum()
    else:
        return per_example


def _reference_focal_loss(inputs, targets, gamma=2.0, reduction="mean"):
    logz = jax.nn.logsumexp(inputs.astype(jnp.float32), axis=1)
    tgt_logit = jnp.take_along_axis(
        inputs.astype(jnp.float32), targets[:, None].astype(jnp.int32), axis=1
    )[:, 0]
    ce = logz - tgt_logit
    pt = jnp.exp(-ce)
    fl = (1.0 - pt) ** gamma * ce
    if reduction == "mean":
        return fl.mean()
    elif reduction == "sum":
        return fl.sum()
    return fl


if __name__ == "__main__":
    key = jax.random.PRNGKey(0)

    # --- Small classification-shaped problem: N=12 examples, C=10 classes ---
    # (12 is not a multiple of 8, so this exercises the masked edge block.)
    N, C = 12, 10
    k_x, k_t, key = jax.random.split(key, 3)
    logits = jax.random.normal(k_x, (N, C), dtype=jnp.float32)
    targets = jax.random.randint(k_t, (N,), 0, C, dtype=jnp.int32)

    per_ex = jax.block_until_ready(focal_loss(logits, targets, gamma=2.0, reduction="none"))
    ref_per_ex = _reference_focal_loss(logits, targets, 2.0, "none")
    assert per_ex.shape == (N,)
    assert jnp.allclose(per_ex, ref_per_ex, atol=1e-5, rtol=1e-5)

    loss_mean = jax.block_until_ready(focal_loss(logits, targets, gamma=2.0, reduction="mean"))
    assert jnp.allclose(loss_mean, _reference_focal_loss(logits, targets, 2.0, "mean"),
                        atol=1e-5, rtol=1e-5)

    loss_sum = jax.block_until_ready(focal_loss(logits, targets, gamma=2.0, reduction="sum"))
    assert jnp.allclose(loss_sum, _reference_focal_loss(logits, targets, 2.0, "sum"),
                        atol=1e-5, rtol=1e-5)

    # --- Lane-aligned C with a partial edge block: N=44, C=256 ---
    N2, C2 = 44, 256
    k_x, k_t, key = jax.random.split(key, 3)
    logits2 = jax.random.normal(k_x, (N2, C2), dtype=jnp.float32)
    targets2 = jax.random.randint(k_t, (N2,), 0, C2, dtype=jnp.int32)
    out2 = jax.block_until_ready(focal_loss(logits2, targets2, gamma=2.0, reduction="none"))
    ref2 = _reference_focal_loss(logits2, targets2, 2.0, "none")
    assert jnp.allclose(out2, ref2, atol=1e-5, rtol=1e-5)

    # --- bf16 logits stay bf16 at the kernel boundary (upcast inside) ---
    N3, C3 = 20, 384
    k_x, k_t, key = jax.random.split(key, 3)
    logits3 = jax.random.normal(k_x, (N3, C3), dtype=jnp.float32).astype(jnp.bfloat16)
    targets3 = jax.random.randint(k_t, (N3,), 0, C3, dtype=jnp.int32)
    out3 = jax.block_until_ready(focal_loss(logits3, targets3, gamma=2.0, reduction="none"))
    ref3 = _reference_focal_loss(logits3, targets3, 2.0, "none")
    assert jnp.allclose(out3, ref3, atol=1e-4, rtol=1e-4)

    print("KERNEL_OK")
</pallas_src>

<mosaic_0001>
module attributes {stable_mosaic.version = 11 : i64} {
  func.func @_focal_loss_kernel(%arg0: i32, %arg1: memref<8x10xf32, #tpu.memory_space<vmem>>, %arg2: memref<8x1xi32, #tpu.memory_space<vmem>>, %arg3: memref<8x1xf32, #tpu.memory_space<vmem>>) attributes {dimension_semantics = [#tpu.dimension_semantics<parallel>], iteration_bounds = array<i64: 2>, scalar_prefetch = 0 : i64, scratch_operands = 0 : i64, tpu.core_type = #tpu.core_type<tc>, window_params = [{transform_indices = @transform_0, window_bounds = array<i64: 8, 10>}, {transform_indices = @transform_1, window_bounds = array<i64: 8, 1>}, {transform_indices = @transform_2, window_bounds = array<i64: 8, 1>}]} {
    %c0 = arith.constant 0 : index
    %c0_0 = arith.constant 0 : index
    %0 = vector.load %arg1[%c0, %c0_0] : memref<8x10xf32, #tpu.memory_space<vmem>>, vector<8x10xf32>
    %c0_1 = arith.constant 0 : index
    %c0_2 = arith.constant 0 : index
    %1 = vector.load %arg2[%c0_1, %c0_2] : memref<8x1xi32, #tpu.memory_space<vmem>>, vector<8x1xi32>
    %cst = arith.constant dense<0xFF800000> : vector<8xf32>
    %2 = vector.multi_reduction <maximumf>, %0, %cst [1] : vector<8x10xf32> to vector<8xf32>
    %3 = vector.shape_cast %2 : vector<8xf32> to vector<8x1xf32>
    %4 = vector.broadcast %3 : vector<8x1xf32> to vector<8x10xf32>
    %5 = arith.subf %0, %4 : vector<8x10xf32>
    %6 = math.exp %5 : vector<8x10xf32>
    %cst_3 = arith.constant dense<0.000000e+00> : vector<8xf32>
    %7 = vector.multi_reduction <add>, %6, %cst_3 [1] : vector<8x10xf32> to vector<8xf32>
    %8 = vector.shape_cast %7 : vector<8xf32> to vector<8x1xf32>
    %9 = math.log %8 : vector<8x1xf32>
    %10 = arith.addf %9, %3 : vector<8x1xf32>
    %11 = tpu.iota {dimensions = array<i32: 1>} : vector<8x10xi32>
    %12 = vector.broadcast %1 : vector<8x1xi32> to vector<8x10xi32>
    %13 = arith.cmpi eq, %11, %12 : vector<8x10xi32>
    %cst_4 = arith.constant 0.000000e+00 : f32
    %14 = vector.broadcast %cst_4 : f32 to vector<8x10xf32>
    %15 = arith.select %13, %0, %14 : vector<8x10xi1>, vector<8x10xf32>
    %cst_5 = arith.constant dense<0.000000e+00> : vector<8xf32>
    %16 = vector.multi_reduction <add>, %15, %cst_5 [1] : vector<8x10xf32> to vector<8xf32>
    %17 = vector.shape_cast %16 : vector<8xf32> to vector<8x1xf32>
    %18 = arith.subf %10, %17 : vector<8x1xf32>
    %cst_6 = arith.constant 0.000000e+00 : f32
    %19 = vector.broadcast %cst_6 : f32 to vector<8x1xf32>
    %20 = arith.subf %19, %18 : vector<8x1xf32>
    %21 = math.exp %20 : vector<8x1xf32>
    %cst_7 = arith.constant 1.000000e+00 : f32
    %22 = vector.broadcast %cst_7 : f32 to vector<8x1xf32>
    %23 = arith.subf %22, %21 : vector<8x1xf32>
    %cst_8 = arith.constant 0.000000e+00 : f32
    %24 = vector.broadcast %cst_8 : f32 to vector<8x1xf32>
    %25 = arith.maximumf %23, %24 : vector<8x1xf32>
    %26 = arith.mulf %25, %25 : vector<8x1xf32>
    %27 = arith.mulf %26, %18 : vector<8x1xf32>
    %c0_9 = arith.constant 0 : index
    %c0_10 = arith.constant 0 : index
    %28 = vector.load %arg3[%c0_9, %c0_10] : memref<8x1xf32, #tpu.memory_space<vmem>>, vector<8x1xf32>
    tpu.vector_store %arg3[%c0_9, %c0_10], %27 {strides = array<i32>} : memref<8x1xf32, #tpu.memory_space<vmem>>, vector<8x1xf32>,
    return
  }
  func.func @transform_0(%arg0: i32) -> (i32, i32) {
    %c0_i32 = arith.constant 0 : i32
    %c0_i32_0 = arith.constant 0 : i32
    return %arg0, %c0_i32 : i32, i32
  }
  func.func @transform_1(%arg0: i32) -> (i32, i32) {
    %c0_i32 = arith.constant 0 : i32
    %c0_i32_0 = arith.constant 0 : i32
    return %arg0, %c0_i32 : i32, i32
  }
  func.func @transform_2(%arg0: i32) -> (i32, i32) {
    %c0_i32 = arith.constant 0 : i32
    %c0_i32_0 = arith.constant 0 : i32
    return %arg0, %c0_i32 : i32, i32
  }
}

</mosaic_0001>

<llo_original>
// kernel: tpu_custom_call.1
$region0: #{tpu_custom_call.1}
  #allocation0 [shape = 'u32[]', space=smem, size = 0x4, offset = 0x4, fixed_abs, tag = 'smem constant byte address 0x4 - core index']
  #allocation1 [shape = 'u32[144,128]{1,0:T(1,128)}', space=vmem, size = 0x12000, scoped, tag = 'internal scratch']
  %s0 = inlined_call_operand.vmem [shape: f32[12,10], index: 0, kind: input, shape index: {}]
  %s1 = inlined_call_operand.vmem [shape: s32[12,1], index: 1, kind: input, shape index: {}]
  %s2 = inlined_call_operand.vmem [shape: f32[12,1], index: 2, kind: output, shape index: {}]
  %s3 = sld [smem:[#allocation0]]
  $region41: #{tpu_custom_call.1} parent=0
    _
  %s5 = ssub.s32 1, %s3
  %s6 = scalar_select 0, %s5, %s3
  loop: start=0, step=1, limit=4
  $region2: #{tpu_custom_call.1} parent=0 // loop_pre_header
    _
  $region3: #{tpu_custom_call.1} parent=0 // loop_header
    %s8 = sphi 0, %s12
    %p9 = scmp.ge.s32.totalorder %s8, 4
    %s18 = sphi 0, %s20
    %s21 = sphi 0, %s18
    %s22 = sphi 0, %s21
    %s38 = sphi 0, %s22
    %s44 = sphi 0, %s46
    %s47 = sphi 0, %s44
    %s48 = sphi 0, %s47
    %s64 = sphi 0, %s48
    %s70 = sphi 0, %s72
    %s73 = sphi 0, %s70
    %s74 = sphi 0, %s73
    %s90 = sphi 0, %s74
  $region4: #{tpu_custom_call.1} parent=0 // loop_header_branch
    %11 = sbr.rel (%p9) target = $region8
  $region5: #{tpu_custom_call.1} parent=0 // loop_body
    %s13 = ssub.s32 %s8, 1
    %s14 = ssub.s32 %s8, 2
    %s15 = sadd.s32 %s8, 1
    %s16 = ssub.s32 %s8, %s15
    %p17 = scmp.eq.s32.totalorder %s16, 0
    %s19 = sadd.s32 %s18, 1
    %s20 = scalar_select %p17, %s18, %s19
    %p23 = pneg %p17
    %p24 = scmp.eq.s32.totalorder %s8, 1
    %p25 = por %p23, %p24
    %p26 = scmp.ne.s32.totalorder %s18, %s21
    %p27 = scmp.eq.s32.totalorder %s8, 0
    %p28 = por %p26, %p27
    %p29 = scmp.ne.s32.totalorder %s18, %s21
    %p30 = scmp.eq.s32.totalorder %s13, 1
    %p31 = por %p29, %p30
    %p32 = scmp.ne.s32.totalorder %s21, %s22
    %p33 = scmp.eq.s32.totalorder %s13, 0
    %p34 = por %p32, %p33
    %p35 = scmp.ne.s32.totalorder %s21, %s22
    %p36 = scmp.eq.s32.totalorder %s14, 1
    %p37 = por %p35, %p36
    %p39 = scmp.ne.s32.totalorder %s22, %s38
    %p40 = scmp.eq.s32.totalorder %s14, 0
    %p41 = por %p39, %p40
    %s42 = ssub.s32 %s8, %s15
    %p43 = scmp.eq.s32.totalorder %s42, 0
    %s45 = sadd.s32 %s44, 1
    %s46 = scalar_select %p43, %s44, %s45
    %p49 = pneg %p43
    %p50 = scmp.eq.s32.totalorder %s8, 1
    %p51 = por %p49, %p50
    %p52 = scmp.ne.s32.totalorder %s44, %s47
    %p53 = scmp.eq.s32.totalorder %s8, 0
    %p54 = por %p52, %p53
    %p55 = scmp.ne.s32.totalorder %s44, %s47
    %p56 = scmp.eq.s32.totalorder %s13, 1
    %p57 = por %p55, %p56
    %p58 = scmp.ne.s32.totalorder %s47, %s48
    %p59 = scmp.eq.s32.totalorder %s13, 0
    %p60 = por %p58, %p59
    %p61 = scmp.ne.s32.totalorder %s47, %s48
    %p62 = scmp.eq.s32.totalorder %s14, 1
    %p63 = por %p61, %p62
    %p65 = scmp.ne.s32.totalorder %s48, %s64
    %p66 = scmp.eq.s32.totalorder %s14, 0
    %p67 = por %p65, %p66
    %s68 = ssub.s32 %s8, %s15
    %p69 = scmp.eq.s32.totalorder %s68, 0
    %s71 = sadd.s32 %s70, 1
    %s72 = scalar_select %p69, %s70, %s71
    %p75 = pneg %p69
    %p76 = scmp.eq.s32.totalorder %s8, 1
    %p77 = por %p75, %p76
    %p78 = scmp.ne.s32.totalorder %s70, %s73
    %p79 = scmp.eq.s32.totalorder %s8, 0
    %p80 = por %p78, %p79
    %p81 = scmp.ne.s32.totalorder %s70, %s73
    %p82 = scmp.eq.s32.totalorder %s13, 1
    %p83 = por %p81, %p82
    %p84 = scmp.ne.s32.totalorder %s73, %s74
    %p85 = scmp.eq.s32.totalorder %s13, 0
    %p86 = por %p84, %p85
    %p87 = scmp.ne.s32.totalorder %s73, %s74
    %p88 = scmp.eq.s32.totalorder %s14, 1
    %p89 = por %p87, %p88
    %p91 = scmp.ne.s32.totalorder %s74, %s90
    %p92 = scmp.eq.s32.totalorder %s14, 0
    %p93 = por %p91, %p92
    %p94 = scmp.le.s32.totalorder 1, %s8
    %p95 = scmp.lt.s32.totalorder %s8, 3
    %p96 = pnand %p94, %p95
    %p97 = pneg %p96
    // Predicated region
    $region9: #{tpu_custom_call.1} parent=5 // pred_check
      _
    $region10: #{tpu_custom_call.1} parent=5 // pred_check_branch
      %99 = sbr.rel (%p96) target = $region12
    $region11: #{tpu_custom_call.1} parent=5 // pred_region
      %s100 = ssub.s32 %s8, 1
    $region12: #{tpu_custom_call.1} parent=5 // pred_fallthru
      _
    %p101 = scmp.lt.s32.totalorder %s8, 2
    // Predicated region
    $region13: #{tpu_custom_call.1} parent=5 // pred_check
      %p102 = pneg %p101
    $region14: #{tpu_custom_call.1} parent=5 // pred_check_branch
      %104 = sbr.rel (%p102) target = $region16
    $region15: #{tpu_custom_call.1} parent=5 // pred_region
      // Predicated region
      $region17: #{tpu_custom_call.1} parent=15 // pred_check
        %p105 = pneg %p28
      $region18: #{tpu_custom_call.1} parent=15 // pred_check_branch
        %107 = sbr.rel (%p105) target = $region20
      $region19: #{tpu_custom_call.1} parent=15 // pred_region
        %p108 = scmp.lt.s32.totalorder %s8, 1
        %s109 = scalar_select %p108, %s8, 1
        %s110 = smul.addr %s109, 8
        %s111 = scalar_lea.vmem %s0, %s110
      $region20: #{tpu_custom_call.1} parent=15 // pred_fallthru
        _
      // Predicated region
      $region21: #{tpu_custom_call.1} parent=15 // pred_check
        %p112 = pneg %p54
      $region22: #{tpu_custom_call.1} parent=15 // pred_check_branch
        %114 = sbr.rel (%p112) target = $region24
      $region23: #{tpu_custom_call.1} parent=15 // pred_region
        %p115 = scmp.lt.s32.totalorder %s8, 1
        %s116 = scalar_select %p115, %s8, 1
        %s117 = smul.addr %s116, 8
        %s118 = scalar_lea.vmem %s1, %s117
      $region24: #{tpu_custom_call.1} parent=15 // pred_fallthru
        _
    $region16: #{tpu_custom_call.1} parent=5 // pred_fallthru
      _
    %p119 = scmp.le.s32.totalorder 1, %s8
    %p120 = scmp.lt.s32.totalorder %s8, 3
    %p121 = pnand %p119, %p120
    %p122 = pneg %p121
    // Predicated region
    $region25: #{tpu_custom_call.1} parent=5 // pred_check
      _
    $region26: #{tpu_custom_call.1} parent=5 // pred_check_branch
      %124 = sbr.rel (%p121) target = $region28
    $region27: #{tpu_custom_call.1} parent=5 // pred_region
      %s125 = ssub.s32 %s8, 1
      %p126 = scmp.lt.s32.totalorder %s13, 1
      %s127 = scalar_select %p126, %s13, 1
      %s128 = smul.addr %s127, 8
      %s129 = scalar_lea.vmem %s0, %s128
      %p130 = pneg %p34
      %p131 = pneg %p31
      %p132 = scmp.lt.s32.totalorder %s13, 1
      %s133 = scalar_select %p132, %s13, 1
      %s134 = smul.addr %s133, 8
      %s135 = scalar_lea.vmem %s1, %s134
      %p136 = pneg %p60
      %p137 = pneg %p57
      %p138 = pneg %p86
      %p139 = pneg %p83
      %p140 = scmp.lt.s32.totalorder %s13, 1
      %s141 = scalar_select %p140, %s13, 1
      %s142 = smul.addr %s141, 8
      %s143 = scalar_lea.vmem %s2, %s142
      %p144 = scmp.lt.s32.totalorder %s13, 1
      %s145 = scalar_select %p144, %s13, 1
      %s146 = smul.addr %s145, 8
      %s147 = scalar_lea.vmem %s0, %s146
      %p148 = scmp.lt.s32.totalorder %s13, 1
      %s149 = scalar_select %p148, %s13, 1
      %s150 = smul.addr %s149, 8
      %s151 = scalar_lea.vmem %s1, %s150
      %p152 = scmp.lt.s32.totalorder %s13, 1
      %s153 = scalar_select %p152, %s13, 1
      %s154 = smul.addr %s153, 8
      %s155 = scalar_lea.vmem %s2, %s154
      %v156 = vld [vmem:[%s147] sm:$0xff]
      %v157 = vld [vmem:[%s151] sm:$0xff]
      %vm158 = vcmask 80896
      %v159 = vsel %vm158, %v156, -inf
      %160 = vmax.xlane.f32.xlu0 %v159
      %v161 = vpop.xlane.xlu0 %160
      %v162 = vsub.f32 %v156, %v161
      %v163 = vmul.f32 %v162, 1.442695
      %v164 = vpow.pop %v163
      %v165 = vsel %vm158, %v164, 0.0
      %166 = vadd.xlane.f32.xlu0 %v165
      %v167 = vpop.xlane.xlu0 %166
      %v168 = vlog2.pop %v167
      %v169 = vmul.f32 %v168, 0.6931472
      %v170 = vadd.f32 %v169, %v161
      %v171 = vlaneseq
      %v172 = vand.u32 %v171, 127
      %173 = vset.pattern.permute.xlu0 0
      %174 = vperm.xlu0 %173, %v157
      %v175 = vpop.permute.xlu0 %174
      %vm176 = vcmp.eq.s32.totalorder %v172, %v175
      %v177 = vsel %vm176, %v156, 0.0
      %v178 = vsel %vm158, %v177, 0.0
      %179 = vadd.xlane.f32.xlu0 %v178
      %v180 = vpop.xlane.xlu0 %179
      %v181 = vsub.f32 %v170, %v180
      %v182 = vsub.f32 0.0, %v181
      %v183 = vmul.f32 %v182, 1.442695
      %v184 = vpow.pop %v183
      %v185 = vsub.f32 1.0, %v184
      %v186 = vmax.f32 %v185, 0.0
      %v187 = vmul.f32 %v186, %v186
      %v188 = vmul.f32 %v187, %v181
      %vm189 = vcmask 7168
      %190 = vst.msk [vmem:[%s155] sm:$0xff] %vm189, %v188
      %p191 = scmp.lt.s32.totalorder %s13, 1
      %s192 = scalar_select %p191, %s13, 1
      %s193 = smul.addr %s192, 8
      %s194 = scalar_lea.vmem %s2, %s193
      // Predicated region
      $region29: #{tpu_custom_call.1} parent=27 // pred_check
        %p195 = pneg %p83
      $region30: #{tpu_custom_call.1} parent=27 // pred_check_branch
        %197 = sbr.rel (%p195) target = $region32
      $region31: #{tpu_custom_call.1} parent=27 // pred_region
        _
      $region32: #{tpu_custom_call.1} parent=27 // pred_fallthru
        _
    $region28: #{tpu_custom_call.1} parent=5 // pred_fallthru
      _
    %p198 = scmp.le.s32.totalorder 2, %s8
    // Predicated region
    $region33: #{tpu_custom_call.1} parent=5 // pred_check
      %p199 = pneg %p198
    $region34: #{tpu_custom_call.1} parent=5 // pred_check_branch
      %201 = sbr.rel (%p199) target = $region36
    $region35: #{tpu_custom_call.1} parent=5 // pred_region
      %s202 = ssub.s32 %s8, 2
      // Predicated region
      $region37: #{tpu_custom_call.1} parent=35 // pred_check
        %p203 = pneg %p89
      $region38: #{tpu_custom_call.1} parent=35 // pred_check_branch
        %205 = sbr.rel (%p203) target = $region40
      $region39: #{tpu_custom_call.1} parent=35 // pred_region
        %p206 = scmp.lt.s32.totalorder %s14, 1
        %s207 = scalar_select %p206, %s14, 1
        %s208 = smul.addr %s207, 8
        %s209 = scalar_lea.vmem %s2, %s208
      $region40: #{tpu_custom_call.1} parent=35 // pred_fallthru
        _
    $region36: #{tpu_custom_call.1} parent=5 // pred_fallthru
      _
  $region6: #{tpu_custom_call.1} parent=0 // loop_footer
    %s12 = sadd.s32 1, %s8
  $region7: #{tpu_custom_call.1} parent=0 // loop_footer_branch
    %7 = sbr.rel target = $region3
  $region8: #{tpu_custom_call.1} parent=0 // loop_exit
    _

</llo_original>
